<compile_context>
chip_gen: v7x
topology: tpu7x:2x2x1
jax: 0.10.0
libtpu: 0.0.40
codegen_flags: <defaults>
</compile_context>

<pallas_src>
import functools

import jax
import jax.numpy as jnp
import numpy as np
from jax.experimental import pallas as pl
from jax.experimental.pallas import tpu as pltpu

# ----------------------------- configuration --------------------------------
N_AGENTS = 4
N_ACTIONS = 5
STATE_DIM = 32            # np.prod(args.state_shape)
ACTION_DIM = N_AGENTS * N_ACTIONS
N_HEAD = 2
EMBED_DIM = 32            # args.mixing_embed_dim
EPS = 1e-10

LANE = 128                # TPU lane width
SUBLANE = 8               # f32 sublane tile


def _round_up(x, m):
    return ((x + m - 1) // m) * m


def _cdiv(a, b):
    return (a + b - 1) // b


# ------------------------------- kernel -------------------------------------
def _fop_mixer_kernel(qv_ref, s_ref, a_ref, ws_ref, wa_ref, b_ref, wv2_ref,
                      out_ref, *, na_pad, n_head, embed_pad, eps):
    """One row-tile of the FOP mixer.

    qv_ref : (2*na_pad, TM) f32    feature-major [q ; vs] slab (zero-padded rows)
    s_ref  : (TM, state_dim)       row-major states (read directly from HBM)
    a_ref  : (TM, action_dim)      row-major joint actions
    ws_ref : (out_pad, state_dim)  fused hypernet weights, state part (resident)
    wa_ref : (out_pad, action_dim) fused hypernet weights, action part (resident)
    b_ref  : (out_pad, 1) f32      fused bias column (bv1 rows + bv2 row)
    wv2_ref: (embed_pad, 1) f32    second V-layer weight column (zero-padded)
    out_ref: (1, TM) f32           lane-dense per-row mixed Q
    """
    hdp = n_head * na_pad
    v0 = 3 * hdp

    # Feature-major fused hypernet output: contract the row-major activation
    # tiles against (out, feature) weights (trans-B matmul on the MXU) so the
    # epilogue slices live on aligned sublanes and the output is lane-dense.
    dn = (((1,), (1,)), ((), ()))
    fused = jax.lax.dot_general(ws_ref[...], s_ref[...], dn,
                                preferred_element_type=jnp.float32)
    fused = fused + jax.lax.dot_general(wa_ref[...], a_ref[...], dn,
                                        preferred_element_type=jnp.float32)
    fused = fused + b_ref[...]                                   # (out_pad, TM)

    # lambda weights: |key| (replicated per agent) * sigmoid(agents) * sigmoid(acts)
    keys = jnp.abs(fused[0:hdp, :]) + eps
    agents = jax.nn.sigmoid(fused[hdp:2 * hdp, :])
    acts = jax.nn.sigmoid(fused[2 * hdp:3 * hdp, :])
    lamw = keys * agents * acts                                  # (hdp, TM)
    lam = lamw[0:na_pad, :]
    for h in range(1, n_head):                                   # aligned 8-row slices
        lam = lam + lamw[h * na_pad:(h + 1) * na_pad, :]         # (na_pad, TM)

    # V(s) = ReLU(s @ Wv1 + bv1) . wv2 + bv2  (VPU mul + sublane reduce; no width-1 matmul)
    hidden = jnp.maximum(fused[v0:v0 + embed_pad, :], 0.0)       # (embed_pad, TM)
    v = jnp.sum(hidden * wv2_ref[...], axis=0, keepdims=True)    # (1, TM)
    v = v + fused[v0 + embed_pad:v0 + embed_pad + 1, :]          # + bv2 row

    q = qv_ref[0:na_pad, :]                                      # padded rows are 0
    vsv = qv_ref[na_pad:2 * na_pad, :]
    adv_tot = jnp.sum((q - vsv) * lam, axis=0, keepdims=True)    # (1, TM)
    q_sum = jnp.sum(q, axis=0, keepdims=True)                    # (1, TM)
    # sum_j(q_j + v/n_agents) == sum_j(q_j) + v
    out_ref[...] = adv_tot + q_sum + v


# --------------------------- pure-JAX reference -------------------------------
def fop_mixer_reference(agent_qs, states, actions, vs, params, *,
                        n_agents=N_AGENTS, n_head=N_HEAD, eps=EPS):
    bs, t, _ = agent_qs.shape
    q2 = agent_qs.reshape(bs * t, n_agents).astype(jnp.float32)
    vs2 = vs.reshape(bs * t, n_agents).astype(jnp.float32)
    s2 = states.reshape(bs * t, -1).astype(jnp.float32)
    a2 = actions.reshape(bs * t, -1).astype(jnp.float32)

    h = jnp.maximum(s2 @ params["wv1"] + params["bv1"], 0.0)
    v = h @ params["wv2"] + params["bv2"]                        # (N, 1)

    keys = jnp.abs(s2 @ params["wk"])                            # (N, n_head)
    agents = jax.nn.sigmoid(s2 @ params["wa"])
    acts = jax.nn.sigmoid(s2 @ params["wacts"] + a2 @ params["wacta"])

    lam = jnp.zeros_like(q2)
    for hh in range(n_head):
        lam = lam + (keys[:, hh:hh + 1] + eps) \
            * agents[:, hh * n_agents:(hh + 1) * n_agents] \
            * acts[:, hh * n_agents:(hh + 1) * n_agents]

    adv_tot = jnp.sum((q2 - vs2) * lam, axis=1, keepdims=True)
    v_tot = jnp.sum(q2, axis=1, keepdims=True) + v
    return (adv_tot + v_tot).reshape(bs, t, 1)


# ------------------------------- wrapper -------------------------------------
def fop_mixer_forward(agent_qs, states, actions, vs, params, *,
                      n_agents=N_AGENTS, n_head=N_HEAD, eps=EPS,
                      row_tile=None, min_rows_for_kernel=1024,
                      compute_dtype=None):
    bs, t, _ = agent_qs.shape
    n_rows = bs * t

    # Small-N fast path: launch + weight packing dominate below ~1k rows.
    if n_rows < min_rows_for_kernel:
        return fop_mixer_reference(agent_qs, states, actions, vs, params,
                                   n_agents=n_agents, n_head=n_head, eps=eps)

    if compute_dtype is None:
        # Consume bf16 states/actions as-is if the caller already holds them;
        # otherwise stay in f32 (a host-side bf16 cast would add an HBM pass).
        compute_dtype = states.dtype if states.dtype == jnp.bfloat16 else jnp.float32

    f32 = jnp.float32
    q2 = agent_qs.reshape(n_rows, n_agents).astype(f32)
    vs2 = vs.reshape(n_rows, n_agents).astype(f32)
    s2 = states.reshape(n_rows, -1).astype(compute_dtype)
    a2 = actions.reshape(n_rows, -1).astype(compute_dtype)

    state_dim = s2.shape[1]
    action_dim = a2.shape[1]
    embed_dim = params["wv1"].shape[1]

    # All section offsets padded to 8 sublanes so in-kernel slices stay free views.
    na_pad = _round_up(n_agents, SUBLANE)
    hdp = n_head * na_pad
    embed_pad = _round_up(embed_dim, SUBLANE)
    v0 = 3 * hdp
    out_pad = v0 + embed_pad + SUBLANE      # trailing 8-row section: row 0 holds bv2

    # ---- row tile: multiple of 128, <= 2048, aimed at >= 4 grid steps
    #      (v7x megacore needs >= 2 "parallel" steps). -------------------------
    if row_tile is None:
        row_tile = _round_up(max(_cdiv(n_rows, 4), 1), LANE)
        row_tile = max(LANE, min(2048, row_tile))
    row_tile = _round_up(row_tile, LANE)
    n_blocks = _cdiv(n_rows, row_tile)

    # ---- tiny feature-major [q ; vs] slab (2*na_pad rows, f32 for Q precision);
    #      states/actions are consumed directly, no host repack. ---------------
    zpad = jnp.zeros((na_pad - n_agents, n_rows), f32)
    qvT = jnp.concatenate([q2.T, zpad, vs2.T, zpad], axis=0)     # (2*na_pad, n_rows)

    # ---- fused hypernet weights (built host-side once; resident in VMEM) -----
    wk = params["wk"].astype(f32)            # (state_dim, n_head)
    w_agents = params["wa"].astype(f32)      # (state_dim, n_head*n_agents)
    w_acts_s = params["wacts"].astype(f32)   # (state_dim, n_head*n_agents)
    w_acts_a = params["wacta"].astype(f32)   # (action_dim, n_head*n_agents)

    ws = jnp.zeros((out_pad, state_dim), f32)
    wa = jnp.zeros((out_pad, action_dim), f32)
    bias = jnp.zeros((out_pad, 1), f32)
    for h in range(n_head):
        r = h * na_pad
        ws = ws.at[r:r + n_agents, :].set(                       # keys (replicated/agent)
            jnp.broadcast_to(wk[:, h][None, :], (n_agents, state_dim)))
        ws = ws.at[hdp + r:hdp + r + n_agents, :].set(           # agents extractor
            w_agents[:, h * n_agents:(h + 1) * n_agents].T)
        ws = ws.at[2 * hdp + r:2 * hdp + r + n_agents, :].set(   # action extractor (state part)
            w_acts_s[:, h * n_agents:(h + 1) * n_agents].T)
        wa = wa.at[2 * hdp + r:2 * hdp + r + n_agents, :].set(   # action extractor (action part)
            w_acts_a[:, h * n_agents:(h + 1) * n_agents].T)
    ws = ws.at[v0:v0 + embed_dim, :].set(params["wv1"].astype(f32).T)
    bias = bias.at[v0:v0 + embed_dim, 0].set(params["bv1"].astype(f32).reshape(-1))
    bias = bias.at[v0 + embed_pad, 0].set(params["bv2"].astype(f32).reshape(()))
    wv2 = jnp.zeros((embed_pad, 1), f32)
    wv2 = wv2.at[:embed_dim, :].set(params["wv2"].astype(f32).reshape(embed_dim, 1))

    ws = ws.astype(compute_dtype)
    wa = wa.astype(compute_dtype)

    kernel = functools.partial(_fop_mixer_kernel, na_pad=na_pad, n_head=n_head,
                               embed_pad=embed_pad, eps=eps)

    out = pl.pallas_call(
        kernel,
        out_shape=jax.ShapeDtypeStruct((1, n_rows), jnp.float32),
        grid_spec=pltpu.PrefetchScalarGridSpec(
            num_scalar_prefetch=0,
            grid=(n_blocks,),
            in_specs=[
                pl.BlockSpec((2 * na_pad, row_tile), lambda i: (0, i)),   # q/vs slab
                pl.BlockSpec((row_tile, state_dim), lambda i: (i, 0)),    # states (direct)
                pl.BlockSpec((row_tile, action_dim), lambda i: (i, 0)),   # actions (direct)
                pl.BlockSpec((out_pad, state_dim), lambda i: (0, 0)),     # fused W (state)
                pl.BlockSpec((out_pad, action_dim), lambda i: (0, 0)),    # fused W (action)
                pl.BlockSpec((out_pad, 1), lambda i: (0, 0)),             # fused bias column
                pl.BlockSpec((embed_pad, 1), lambda i: (0, 0)),           # wv2 column
            ],
            out_specs=pl.BlockSpec((1, row_tile), lambda i: (0, i)),      # lane-dense output
        ),
        compiler_params=pltpu.CompilerParams(
            dimension_semantics=("parallel",)),
    )(qvT, s2, a2, ws, wa, bias, wv2)

    return out.reshape(bs, t, 1)


# --------------------------------- main ---------------------------------------
if __name__ == "__main__":
    key = jax.random.PRNGKey(0)
    keys = jax.random.split(key, 16)

    def init(k, shape, scale=0.1):
        return (scale * jax.random.normal(k, shape)).astype(jnp.float32)

    params = {
        "wk":    init(keys[0], (STATE_DIM, N_HEAD)),
        "wa":    init(keys[1], (STATE_DIM, N_HEAD * N_AGENTS)),
        "wacts": init(keys[2], (STATE_DIM, N_HEAD * N_AGENTS)),
        "wacta": init(keys[3], (ACTION_DIM, N_HEAD * N_AGENTS)),
        "wv1":   init(keys[4], (STATE_DIM, EMBED_DIM)),
        "bv1":   init(keys[5], (1, EMBED_DIM)),
        "wv2":   init(keys[6], (EMBED_DIM, 1)),
        "bv2":   init(keys[7], (1, 1)),
    }

    mixer = jax.jit(fop_mixer_forward)

    # ---- Pallas kernel path: bs*T = 2*512 = 1024 rows (row_tile=256, grid=4) ----
    bs, t = 2, 512
    agent_qs = init(keys[8], (bs, t, N_AGENTS), scale=1.0)
    vs_in = init(keys[9], (bs, t, N_AGENTS), scale=1.0)
    states = init(keys[10], (bs, t, STATE_DIM), scale=1.0)
    actions = init(keys[11], (bs, t, ACTION_DIM), scale=1.0)

    out = jax.block_until_ready(mixer(agent_qs, states, actions, vs_in, params))
    ref = fop_mixer_reference(agent_qs, states, actions, vs_in, params)
    np.testing.assert_allclose(np.asarray(out), np.asarray(ref), rtol=5e-4, atol=5e-4)
    assert out.shape == (bs, t, 1)

    # ---- small-shape demo (takes the small-N pure-JAX fast path) ----
    bs_s, t_s = 2, 8
    agent_qs_s = init(keys[12], (bs_s, t_s, N_AGENTS), scale=1.0)
    vs_s = init(keys[13], (bs_s, t_s, N_AGENTS), scale=1.0)
    states_s = init(keys[14], (bs_s, t_s, STATE_DIM), scale=1.0)
    actions_s = init(keys[15], (bs_s, t_s, ACTION_DIM), scale=1.0)
    out_s = jax.block_until_ready(mixer(agent_qs_s, states_s, actions_s, vs_s, params))
    ref_s = fop_mixer_reference(agent_qs_s, states_s, actions_s, vs_s, params)
    np.testing.assert_allclose(np.asarray(out_s), np.asarray(ref_s), rtol=5e-4, atol=5e-4)
    assert out_s.shape == (bs_s, t_s, 1)

    print("KERNEL_OK")
</pallas_src>

<mosaic_0001>
module attributes {stable_mosaic.version = 11 : i64} {
  func.func @_fop_mixer_kernel(%arg0: i32, %arg1: memref<16x256xf32, #tpu.memory_space<vmem>>, %arg2: memref<256x32xf32, #tpu.memory_space<vmem>>, %arg3: memref<256x20xf32, #tpu.memory_space<vmem>>, %arg4: memref<88x32xf32, #tpu.memory_space<vmem>>, %arg5: memref<88x20xf32, #tpu.memory_space<vmem>>, %arg6: memref<88x1xf32, #tpu.memory_space<vmem>>, %arg7: memref<32x1xf32, #tpu.memory_space<vmem>>, %arg8: memref<1x256xf32, #tpu.memory_space<vmem>>) attributes {dimension_semantics = [#tpu.dimension_semantics<parallel>], iteration_bounds = array<i64: 4>, scalar_prefetch = 0 : i64, scratch_operands = 0 : i64, tpu.core_type = #tpu.core_type<tc>, window_params = [{transform_indices = @transform_0, window_bounds = array<i64: 16, 256>}, {transform_indices = @transform_1, window_bounds = array<i64: 256, 32>}, {transform_indices = @transform_2, window_bounds = array<i64: 256, 20>}, {pipeline_mode = #tpu.pipeline_mode<synchronous>, transform_indices = @transform_3, window_bounds = array<i64: 88, 32>}, {pipeline_mode = #tpu.pipeline_mode<synchronous>, transform_indices = @transform_4, window_bounds = array<i64: 88, 20>}, {pipeline_mode = #tpu.pipeline_mode<synchronous>, transform_indices = @transform_5, window_bounds = array<i64: 88, 1>}, {pipeline_mode = #tpu.pipeline_mode<synchronous>, transform_indices = @transform_6, window_bounds = array<i64: 32, 1>}, {transform_indices = @transform_7, window_bounds = array<i64: 1, 256>}]} {
    %c0 = arith.constant 0 : index
    %c0_0 = arith.constant 0 : index
    %0 = vector.load %arg4[%c0, %c0_0] : memref<88x32xf32, #tpu.memory_space<vmem>>, vector<88x32xf32>
    %c0_1 = arith.constant 0 : index
    %c0_2 = arith.constant 0 : index
    %1 = vector.load %arg2[%c0_1, %c0_2] : memref<256x32xf32, #tpu.memory_space<vmem>>, vector<256x32xf32>
    %cst = arith.constant dense<0.000000e+00> : vector<88x256xf32>
    %2 = tpu.matmul %0, %1, %cst {dimension_numbers = #tpu.dot_dimension_numbers<[1], [1], [0], [0], [0, 0, 1, 0], [], []>} : vector<88x32xf32>, vector<256x32xf32>, vector<88x256xf32> -> vector<88x256xf32>
    %c0_3 = arith.constant 0 : index
    %c0_4 = arith.constant 0 : index
    %3 = vector.load %arg5[%c0_3, %c0_4] : memref<88x20xf32, #tpu.memory_space<vmem>>, vector<88x20xf32>
    %c0_5 = arith.constant 0 : index
    %c0_6 = arith.constant 0 : index
    %4 = vector.load %arg3[%c0_5, %c0_6] : memref<256x20xf32, #tpu.memory_space<vmem>>, vector<256x20xf32>
    %cst_7 = arith.constant dense<0.000000e+00> : vector<88x256xf32>
    %5 = tpu.matmul %3, %4, %cst_7 {dimension_numbers = #tpu.dot_dimension_numbers<[1], [1], [0], [0], [0, 0, 1, 0], [], []>} : vector<88x20xf32>, vector<256x20xf32>, vector<88x256xf32> -> vector<88x256xf32>
    %6 = arith.addf %2, %5 : vector<88x256xf32>
    %c0_8 = arith.constant 0 : index
    %c0_9 = arith.constant 0 : index
    %7 = vector.load %arg6[%c0_8, %c0_9] : memref<88x1xf32, #tpu.memory_space<vmem>>, vector<88x1xf32>
    %8 = vector.broadcast %7 : vector<88x1xf32> to vector<88x256xf32>
    %9 = arith.addf %6, %8 : vector<88x256xf32>
    %10 = vector.extract_strided_slice %9 {offsets = [0, 0], sizes = [16, 256], strides = [1, 1]} : vector<88x256xf32> to vector<16x256xf32>
    %11 = math.absf %10 : vector<16x256xf32>
    %cst_10 = arith.constant 1.000000e-10 : f32
    %12 = vector.broadcast %cst_10 : f32 to vector<16x256xf32>
    %13 = arith.addf %11, %12 : vector<16x256xf32>
    %14 = vector.extract_strided_slice %9 {offsets = [16, 0], sizes = [16, 256], strides = [1, 1]} : vector<88x256xf32> to vector<16x256xf32>
    %15 = arith.negf %14 : vector<16x256xf32>
    %16 = math.exp %15 : vector<16x256xf32>
    %cst_11 = arith.constant 1.000000e+00 : f32
    %17 = vector.broadcast %cst_11 : f32 to vector<16x256xf32>
    %18 = arith.addf %17, %16 : vector<16x256xf32>
    %19 = arith.divf %17, %18 : vector<16x256xf32>
    %20 = vector.extract_strided_slice %9 {offsets = [32, 0], sizes = [16, 256], strides = [1, 1]} : vector<88x256xf32> to vector<16x256xf32>
    %21 = arith.negf %20 : vector<16x256xf32>
    %22 = math.exp %21 : vector<16x256xf32>
    %cst_12 = arith.constant 1.000000e+00 : f32
    %23 = vector.broadcast %cst_12 : f32 to vector<16x256xf32>
    %24 = arith.addf %23, %22 : vector<16x256xf32>
    %25 = arith.divf %23, %24 : vector<16x256xf32>
    %26 = arith.mulf %13, %19 : vector<16x256xf32>
    %27 = arith.mulf %26, %25 : vector<16x256xf32>
    %28 = vector.extract_strided_slice %27 {offsets = [0, 0], sizes = [8, 256], strides = [1, 1]} : vector<16x256xf32> to vector<8x256xf32>
    %29 = vector.extract_strided_slice %27 {offsets = [8, 0], sizes = [8, 256], strides = [1, 1]} : vector<16x256xf32> to vector<8x256xf32>
    %30 = arith.addf %28, %29 : vector<8x256xf32>
    %31 = vector.extract_strided_slice %9 {offsets = [48, 0], sizes = [32, 256], strides = [1, 1]} : vector<88x256xf32> to vector<32x256xf32>
    %cst_13 = arith.constant 0.000000e+00 : f32
    %32 = vector.broadcast %cst_13 : f32 to vector<32x256xf32>
    %33 = arith.maximumf %31, %32 : vector<32x256xf32>
    %c0_14 = arith.constant 0 : index
    %c0_15 = arith.constant 0 : index
    %34 = vector.load %arg7[%c0_14, %c0_15] : memref<32x1xf32, #tpu.memory_space<vmem>>, vector<32x1xf32>
    %35 = vector.broadcast %34 : vector<32x1xf32> to vector<32x256xf32>
    %36 = arith.mulf %33, %35 : vector<32x256xf32>
    %cst_16 = arith.constant dense<0.000000e+00> : vector<256xf32>
    %37 = vector.multi_reduction <add>, %36, %cst_16 [0] : vector<32x256xf32> to vector<256xf32>
    %38 = vector.shape_cast %37 : vector<256xf32> to vector<1x256xf32>
    %39 = vector.extract_strided_slice %9 {offsets = [80, 0], sizes = [1, 256], strides = [1, 1]} : vector<88x256xf32> to vector<1x256xf32>
    %40 = arith.addf %38, %39 : vector<1x256xf32>
    %c0_17 = arith.constant 0 : index
    %c0_18 = arith.constant 0 : index
    %41 = vector.load %arg1[%c0_17, %c0_18] : memref<16x256xf32, #tpu.memory_space<vmem>>, vector<8x256xf32>
    %c8 = arith.constant 8 : index
    %c0_19 = arith.constant 0 : index
    %42 = vector.load %arg1[%c8, %c0_19] : memref<16x256xf32, #tpu.memory_space<vmem>>, vector<8x256xf32>
    %43 = arith.subf %41, %42 : vector<8x256xf32>
    %44 = arith.mulf %43, %30 : vector<8x256xf32>
    %cst_20 = arith.constant dense<0.000000e+00> : vector<256xf32>
    %45 = vector.multi_reduction <add>, %44, %cst_20 [0] : vector<8x256xf32> to vector<256xf32>
    %46 = vector.shape_cast %45 : vector<256xf32> to vector<1x256xf32>
    %cst_21 = arith.constant dense<0.000000e+00> : vector<256xf32>
    %47 = vector.multi_reduction <add>, %41, %cst_21 [0] : vector<8x256xf32> to vector<256xf32>
    %48 = vector.shape_cast %47 : vector<256xf32> to vector<1x256xf32>
    %49 = arith.addf %46, %48 : vector<1x256xf32>
    %50 = arith.addf %49, %40 : vector<1x256xf32>
    %c0_22 = arith.constant 0 : index
    %c0_23 = arith.constant 0 : index
    %51 = vector.load %arg8[%c0_22, %c0_23] : memref<1x256xf32, #tpu.memory_space<vmem>>, vector<1x256xf32>
    tpu.vector_store %arg8[%c0_22, %c0_23], %50 {strides = array<i32>} : memref<1x256xf32, #tpu.memory_space<vmem>>, vector<1x256xf32>,
    return
  }
  func.func @transform_0(%arg0: i32) -> (i32, i32) {
    %c0_i32 = arith.constant 0 : i32
    %c0_i32_0 = arith.constant 0 : i32
    return %c0_i32, %arg0 : i32, i32
  }
  func.func @transform_1(%arg0: i32) -> (i32, i32) {
    %c0_i32 = arith.constant 0 : i32
    %c0_i32_0 = arith.constant 0 : i32
    return %arg0, %c0_i32 : i32, i32
  }
  func.func @transform_2(%arg0: i32) -> (i32, i32) {
    %c0_i32 = arith.constant 0 : i32
    %c0_i32_0 = arith.constant 0 : i32
    return %arg0, %c0_i32 : i32, i32
  }
  func.func @transform_3(%arg0: i32) -> (i32, i32) {
    %c0_i32 = arith.constant 0 : i32
    %c0_i32_0 = arith.constant 0 : i32
    %c0_i32_1 = arith.constant 0 : i32
    return %c0_i32, %c0_i32_0 : i32, i32
  }
  func.func @transform_4(%arg0: i32) -> (i32, i32) {
    %c0_i32 = arith.constant 0 : i32
    %c0_i32_0 = arith.constant 0 : i32
    %c0_i32_1 = arith.constant 0 : i32
    return %c0_i32, %c0_i32_0 : i32, i32
  }
  func.func @transform_5(%arg0: i32) -> (i32, i32) {
    %c0_i32 = arith.constant 0 : i32
    %c0_i32_0 = arith.constant 0 : i32
    %c0_i32_1 = arith.constant 0 : i32
    return %c0_i32, %c0_i32_0 : i32, i32
  }
  func.func @transform_6(%arg0: i32) -> (i32, i32) {
    %c0_i32 = arith.constant 0 : i32
    %c0_i32_0 = arith.constant 0 : i32
    %c0_i32_1 = arith.constant 0 : i32
    return %c0_i32, %c0_i32_0 : i32, i32
  }
  func.func @transform_7(%arg0: i32) -> (i32, i32) {
    %c0_i32 = arith.constant 0 : i32
    %c0_i32_0 = arith.constant 0 : i32
    return %c0_i32, %arg0 : i32, i32
  }
}

</mosaic_0001>

<llo_original>
// kernel: fop_mixer_forward.1
$region0: #{fop_mixer_forward.1}
  #allocation0 [shape = 'u32[]', space=smem, size = 0x4, offset = 0x4, fixed_abs, tag = 'smem constant byte address 0x4 - core index']
  #allocation1 [shape = 'u32[144,128]{1,0:T(1,128)}', space=vmem, size = 0x12000, scoped, tag = 'internal scratch']
  %s0 = inlined_call_operand.vmem [shape: f32[16,1024], index: 0, kind: input, shape index: {}]
  %s1 = inlined_call_operand.vmem [shape: f32[1024,32], index: 1, kind: input, shape index: {}]
  %s2 = inlined_call_operand.vmem [shape: f32[1024,20], index: 2, kind: input, shape index: {}]
  %s3 = inlined_call_operand.vmem [shape: f32[88,32], index: 3, kind: input, shape index: {}]
  %s4 = inlined_call_operand.vmem [shape: f32[88,20], index: 4, kind: input, shape index: {}]
  %s5 = inlined_call_operand.vmem [shape: f32[88,1], index: 5, kind: input, shape index: {}]
  %s6 = inlined_call_operand.vmem [shape: f32[32,1], index: 6, kind: input, shape index: {}]
  %s7 = inlined_call_operand.hbm [shape: f32[1,1024], index: 7, kind: output, shape index: {}]
  %s8 = sld [smem:[#allocation0]]
  $region84: #{fop_mixer_forward.1} parent=0
    _
  %s10 = ssub.s32 1, %s8
  %s11 = scalar_select 0, %s10, %s8
  $region1: #{fop_mixer_forward.1} parent=0
    #allocation2 [shape = 'u8[32768]{0}', space=vmem, size = 0x8000, scoped, tag = 'input window, operand 0']
    #allocation3 [shape = 'u8[2048]{0}', space=vmem, size = 0x800, scoped, tag = 'output window, operand 0']
    #allocation4 [shape = 's32[2]{0}', space=sflag, size = 0x8, scoped, tag = 'scoped memory for fop_mixer_forward.1']
    %12 = vsyncpa [#allocation4], 0
    %s13 = scalar_lea.sflag [#allocation4], 1
    %14 = vsyncpa %s13, 0
    loop: start=0, step=1, limit=6
    $region2: #{fop_mixer_forward.1} parent=1 // loop_pre_header
      _
    $region3: #{fop_mixer_forward.1} parent=1 // loop_header
      %s16 = sphi 0, %s20
      %p17 = scmp.ge.s32.totalorder %s16, 6
      %s26 = sphi 0, %s28
      %s29 = sphi 0, %s26
      %s30 = sphi 0, %s29
      %s46 = sphi 0, %s30
      %s52 = sphi 0, %s54
      %s55 = sphi 0, %s52
      %s56 = sphi 0, %s55
      %s72 = sphi 0, %s56
      %s78 = sphi 0, %s80
      %s81 = sphi 0, %s78
      %s82 = sphi 0, %s81
      %s98 = sphi 0, %s82
      %s102 = sphi 0, %s102
      %s104 = sphi 0, %s102
      %s105 = sphi 0, %s104
      %s119 = sphi 0, %s105
      %s123 = sphi 0, %s123
      %s125 = sphi 0, %s123
      %s126 = sphi 0, %s125
      %s140 = sphi 0, %s126
      %s144 = sphi 0, %s144
      %s146 = sphi 0, %s144
      %s147 = sphi 0, %s146
      %s161 = sphi 0, %s147
      %s165 = sphi 0, %s165
      %s167 = sphi 0, %s165
      %s168 = sphi 0, %s167
      %s182 = sphi 0, %s168
      %s188 = sphi 0, %s190
      %s191 = sphi 0, %s188
      %s192 = sphi 0, %s191
      %s208 = sphi 0, %s192
    $region4: #{fop_mixer_forward.1} parent=1 // loop_header_branch
      %19 = sbr.rel (%p17) target = $region8
    $region5: #{fop_mixer_forward.1} parent=1 // loop_body
      %s21 = ssub.s32 %s16, 1
      %s22 = ssub.s32 %s16, 2
      %s23 = sadd.s32 %s16, 1
      %s24 = ssub.s32 %s16, %s23
      %p25 = scmp.eq.s32.totalorder %s24, 0
      %s27 = sadd.s32 %s26, 1
      %s28 = scalar_select %p25, %s26, %s27
      %p31 = pneg %p25
      %p32 = scmp.eq.s32.totalorder %s16, 3
      %p33 = por %p31, %p32
      %p34 = scmp.ne.s32.totalorder %s26, %s29
      %p35 = scmp.eq.s32.totalorder %s16, 0
      %p36 = por %p34, %p35
      %p37 = scmp.ne.s32.totalorder %s26, %s29
      %p38 = scmp.eq.s32.totalorder %s21, 3
      %p39 = por %p37, %p38
      %p40 = scmp.ne.s32.totalorder %s29, %s30
      %p41 = scmp.eq.s32.totalorder %s21, 0
      %p42 = por %p40, %p41
      %p43 = scmp.ne.s32.totalorder %s29, %s30
      %p44 = scmp.eq.s32.totalorder %s22, 3
      %p45 = por %p43, %p44
      %p47 = scmp.ne.s32.totalorder %s30, %s46
      %p48 = scmp.eq.s32.totalorder %s22, 0
      %p49 = por %p47, %p48
      %s50 = ssub.s32 %s16, %s23
      %p51 = scmp.eq.s32.totalorder %s50, 0
      %s53 = sadd.s32 %s52, 1
      %s54 = scalar_select %p51, %s52, %s53
      %p57 = pneg %p51
      %p58 = scmp.eq.s32.totalorder %s16, 3
      %p59 = por %p57, %p58
      %p60 = scmp.ne.s32.totalorder %s52, %s55
      %p61 = scmp.eq.s32.totalorder %s16, 0
      %p62 = por %p60, %p61
      %p63 = scmp.ne.s32.totalorder %s52, %s55
      %p64 = scmp.eq.s32.totalorder %s21, 3
      %p65 = por %p63, %p64
      %p66 = scmp.ne.s32.totalorder %s55, %s56
      %p67 = scmp.eq.s32.totalorder %s21, 0
      %p68 = por %p66, %p67
      %p69 = scmp.ne.s32.totalorder %s55, %s56
      %p70 = scmp.eq.s32.totalorder %s22, 3
      %p71 = por %p69, %p70
      %p73 = scmp.ne.s32.totalorder %s56, %s72
      %p74 = scmp.eq.s32.totalorder %s22, 0
      %p75 = por %p73, %p74
      %s76 = ssub.s32 %s16, %s23
      %p77 = scmp.eq.s32.totalorder %s76, 0
      %s79 = sadd.s32 %s78, 1
      %s80 = scalar_select %p77, %s78, %s79
      %p83 = pneg %p77
      %p84 = scmp.eq.s32.totalorder %s16, 3
      %p85 = por %p83, %p84
      %p86 = scmp.ne.s32.totalorder %s78, %s81
      %p87 = scmp.eq.s32.totalorder %s16, 0
      %p88 = por %p86, %p87
      %p89 = scmp.ne.s32.totalorder %s78, %s81
      %p90 = scmp.eq.s32.totalorder %s21, 3
      %p91 = por %p89, %p90
      %p92 = scmp.ne.s32.totalorder %s81, %s82
      %p93 = scmp.eq.s32.totalorder %s21, 0
      %p94 = por %p92, %p93
      %p95 = scmp.ne.s32.totalorder %s81, %s82
      %p96 = scmp.eq.s32.totalorder %s22, 3
      %p97 = por %p95, %p96
      %p99 = scmp.ne.s32.totalorder %s82, %s98
      %p100 = scmp.eq.s32.totalorder %s22, 0
      %p101 = por %p99, %p100
      %s103 = sadd.s32 %s102, 1
      %p106 = scmp.eq.s32.totalorder %s16, 3
      %p107 = scmp.ne.s32.totalorder %s102, %s104
      %p108 = scmp.eq.s32.totalorder %s16, 0
      %p109 = por %p107, %p108
      %p110 = scmp.ne.s32.totalorder %s102, %s104
      %p111 = scmp.eq.s32.totalorder %s21, 3
      %p112 = por %p110, %p111
      %p113 = scmp.ne.s32.totalorder %s104, %s105
      %p114 = scmp.eq.s32.totalorder %s21, 0
      %p115 = por %p113, %p114
      %p116 = scmp.ne.s32.totalorder %s104, %s105
      %p117 = scmp.eq.s32.totalorder %s22, 3
      %p118 = por %p116, %p117
      %p120 = scmp.ne.s32.totalorder %s105, %s119
      %p121 = scmp.eq.s32.totalorder %s22, 0
      %p122 = por %p120, %p121
      %s124 = sadd.s32 %s123, 1
      %p127 = scmp.eq.s32.totalorder %s16, 3
      %p128 = scmp.ne.s32.totalorder %s123, %s125
      %p129 = scmp.eq.s32.totalorder %s16, 0
      %p130 = por %p128, %p129
      %p131 = scmp.ne.s32.totalorder %s123, %s125
      %p132 = scmp.eq.s32.totalorder %s21, 3
      %p133 = por %p131, %p132
      %p134 = scmp.ne.s32.totalorder %s125, %s126
      %p135 = scmp.eq.s32.totalorder %s21, 0
      %p136 = por %p134, %p135
      %p137 = scmp.ne.s32.totalorder %s125, %s126
      %p138 = scmp.eq.s32.totalorder %s22, 3
      %p139 = por %p137, %p138
      %p141 = scmp.ne.s32.totalorder %s126, %s140
      %p142 = scmp.eq.s32.totalorder %s22, 0
      %p143 = por %p141, %p142
      %s145 = sadd.s32 %s144, 1
      %p148 = scmp.eq.s32.totalorder %s16, 3
      %p149 = scmp.ne.s32.totalorder %s144, %s146
      %p150 = scmp.eq.s32.totalorder %s16, 0
      %p151 = por %p149, %p150
      %p152 = scmp.ne.s32.totalorder %s144, %s146
      %p153 = scmp.eq.s32.totalorder %s21, 3
      %p154 = por %p152, %p153
      %p155 = scmp.ne.s32.totalorder %s146, %s147
      %p156 = scmp.eq.s32.totalorder %s21, 0
      %p157 = por %p155, %p156
      %p158 = scmp.ne.s32.totalorder %s146, %s147
      %p159 = scmp.eq.s32.totalorder %s22, 3
      %p160 = por %p158, %p159
      %p162 = scmp.ne.s32.totalorder %s147, %s161
      %p163 = scmp.eq.s32.totalorder %s22, 0
      %p164 = por %p162, %p163
      %s166 = sadd.s32 %s165, 1
      %p169 = scmp.eq.s32.totalorder %s16, 3
      %p170 = scmp.ne.s32.totalorder %s165, %s167
      %p171 = scmp.eq.s32.totalorder %s16, 0
      %p172 = por %p170, %p171
      %p173 = scmp.ne.s32.totalorder %s165, %s167
      %p174 = scmp.eq.s32.totalorder %s21, 3
      %p175 = por %p173, %p174
      %p176 = scmp.ne.s32.totalorder %s167, %s168
      %p177 = scmp.eq.s32.totalorder %s21, 0
      %p178 = por %p176, %p177
      %p179 = scmp.ne.s32.totalorder %s167, %s168
      %p180 = scmp.eq.s32.totalorder %s22, 3
      %p181 = por %p179, %p180
      %p183 = scmp.ne.s32.totalorder %s168, %s182
      %p184 = scmp.eq.s32.totalorder %s22, 0
      %p185 = por %p183, %p184
      %s186 = ssub.s32 %s16, %s23
      %p187 = scmp.eq.s32.totalorder %s186, 0
      %s189 = sadd.s32 %s188, 1
      %s190 = scalar_select %p187, %s188, %s189
      %p193 = pneg %p187
      %p194 = scmp.eq.s32.totalorder %s16, 3
      %p195 = por %p193, %p194
      %p196 = scmp.ne.s32.totalorder %s188, %s191
      %p197 = scmp.eq.s32.totalorder %s16, 0
      %p198 = por %p196, %p197
      %p199 = scmp.ne.s32.totalorder %s188, %s191
      %p200 = scmp.eq.s32.totalorder %s21, 3
      %p201 = por %p199, %p200
      %p202 = scmp.ne.s32.totalorder %s191, %s192
      %p203 = scmp.eq.s32.totalorder %s21, 0
      %p204 = por %p202, %p203
      %p205 = scmp.ne.s32.totalorder %s191, %s192
      %p206 = scmp.eq.s32.totalorder %s22, 3
      %p207 = por %p205, %p206
      %p209 = scmp.ne.s32.totalorder %s192, %s208
      %p210 = scmp.eq.s32.totalorder %s22, 0
      %p211 = por %p209, %p210
      %p212 = scmp.le.s32.totalorder 1, %s16
      %p213 = scmp.lt.s32.totalorder %s16, 5
      %p214 = pnand %p212, %p213
      %p215 = pneg %p214
      // Predicated region
      $region9: #{fop_mixer_forward.1} parent=5 // pred_check
        _
      $region10: #{fop_mixer_forward.1} parent=5 // pred_check_branch
        %217 = sbr.rel (%p214) target = $region12
      $region11: #{fop_mixer_forward.1} parent=5 // pred_region
        %s218 = ssub.s32 %s16, 1
        // Predicated region
        $region13: #{fop_mixer_forward.1} parent=11 // pred_check
          %p219 = pneg %p115
        $region14: #{fop_mixer_forward.1} parent=11 // pred_check_branch
          %221 = sbr.rel (%p219) target = $region16
        $region15: #{fop_mixer_forward.1} parent=11 // pred_region
          _
        $region16: #{fop_mixer_forward.1} parent=11 // pred_fallthru
          _
        // Predicated region
        $region17: #{fop_mixer_forward.1} parent=11 // pred_check
          %p222 = pneg %p136
        $region18: #{fop_mixer_forward.1} parent=11 // pred_check_branch
          %224 = sbr.rel (%p222) target = $region20
        $region19: #{fop_mixer_forward.1} parent=11 // pred_region
          _
        $region20: #{fop_mixer_forward.1} parent=11 // pred_fallthru
          _
        // Predicated region
        $region21: #{fop_mixer_forward.1} parent=11 // pred_check
          %p225 = pneg %p157
        $region22: #{fop_mixer_forward.1} parent=11 // pred_check_branch
          %227 = sbr.rel (%p225) target = $region24
        $region23: #{fop_mixer_forward.1} parent=11 // pred_region
          _
        $region24: #{fop_mixer_forward.1} parent=11 // pred_fallthru
          _
        // Predicated region
        $region25: #{fop_mixer_forward.1} parent=11 // pred_check
          %p228 = pneg %p178
        $region26: #{fop_mixer_forward.1} parent=11 // pred_check_branch
          %230 = sbr.rel (%p228) target = $region28
        $region27: #{fop_mixer_forward.1} parent=11 // pred_region
          _
        $region28: #{fop_mixer_forward.1} parent=11 // pred_fallthru
          _
      $region12: #{fop_mixer_forward.1} parent=5 // pred_fallthru
        _
      %p231 = scmp.lt.s32.totalorder %s16, 4
      // Predicated region
      $region29: #{fop_mixer_forward.1} parent=5 // pred_check
        %p232 = pneg %p231
      $region30: #{fop_mixer_forward.1} parent=5 // pred_check_branch
        %234 = sbr.rel (%p232) target = $region32
      $region31: #{fop_mixer_forward.1} parent=5 // pred_region
        // Predicated region
        $region33: #{fop_mixer_forward.1} parent=31 // pred_check
          %p235 = pneg %p36
        $region34: #{fop_mixer_forward.1} parent=31 // pred_check_branch
          %237 = sbr.rel (%p235) target = $region36
        $region35: #{fop_mixer_forward.1} parent=31 // pred_region
          %s238 = sand.u32 %s26, 1
          %s239 = sand.u32 %s26, 1
          %s240 = smul.addr %s239, 32
          %s241 = scalar_lea.vmem [#allocation2], %s240
          %s242 = smul.u32 2, %s16
          %s243 = smul.addr %s242, 8
          %s244 = scalar_lea.vmem %s0, %s243
          // Predicated region
          $region37: #{fop_mixer_forward.1} parent=35 // pred_check
            _
          $region38: #{fop_mixer_forward.1} parent=35 // pred_check_branch
            %246 = sbr.rel (0) target = $region40
          $region39: #{fop_mixer_forward.1} parent=35 // pred_region
            // Predicated region
            $region41: #{fop_mixer_forward.1} parent=39 // pred_check
              _
            $region42: #{fop_mixer_forward.1} parent=39 // pred_check_branch
              %248 = sbr.rel (0) target = $region44
            $region43: #{fop_mixer_forward.1} parent=39 // pred_region
              loop: start=0, step=1, limit=1
              $region45: #{fop_mixer_forward.1} parent=43 // loop_pre_header
                _
              $region46: #{fop_mixer_forward.1} parent=43 // loop_header
                %s250 = sphi 0, %s254
                %p251 = scmp.ge.s32.totalorder %s250, 1
                %s255 = sphi %s244, %s244
                %s256 = sphi %s241, %s241
              $region47: #{fop_mixer_forward.1} parent=43 // loop_header_branch
                %253 = sbr.rel (%p251) target = $region51
              $region48: #{fop_mixer_forward.1} parent=43 // loop_body
                %v257 = vld [vmem:[%s255] sm:$0xff]
                %258 = vst [vmem:[%s256] sm:$0xff] %v257
                %v259 = vld [vmem:[%s255 + $0x8] sm:$0xff]
                %260 = vst [vmem:[%s256 + $0x8] sm:$0xff] %v259
                %v261 = vld [vmem:[%s255 + $0x40] sm:$0xff]
                %262 = vst [vmem:[%s256 + $0x10] sm:$0xff] %v261
                %v263 = vld [vmem:[%s255 + $0x48] sm:$0xff]
                %264 = vst [vmem:[%s256 + $0x18] sm:$0xff] %v263
              $region49: #{fop_mixer_forward.1} parent=43 // loop_footer
                %s254 = sadd.s32 1, %s250
              $region50: #{fop_mixer_forward.1} parent=43 // loop_footer_branch
                %249 = sbr.rel target = $region46
              $region51: #{fop_mixer_forward.1} parent=43 // loop_exit
                _
            $region44: #{fop_mixer_forward.1} parent=39 // pred_fallthru
              _
            // Predicated region
            $region52: #{fop_mixer_forward.1} parent=39 // pred_check
              _
            $region53: #{fop_mixer_forward.1} parent=39 // pred_check_branch
              %266 = sbr.rel target = $region55
            $region54: #{fop_mixer_forward.1} parent=39 // pred_region
              _
            $region55: #{fop_mixer_forward.1} parent=39 // pred_fallthru
              _
          $region40: #{fop_mixer_forward.1} parent=35 // pred_fallthru
            _
          %267 = vnop
        $region36: #{fop_mixer_forward.1} parent=31 // pred_fallthru
          _
        // Predicated region
        $region56: #{fop_mixer_forward.1} parent=31 // pred_check
          %p268 = pneg %p62
        $region57: #{fop_mixer_forward.1} parent=31 // pred_check_branch
          %270 = sbr.rel (%p268) target = $region59
        $region58: #{fop_mixer_forward.1} parent=31 // pred_region
          %s271 = smul.u32 32, %s16
          %p272 = scmp.lt.s32.totalorder %s271, 127
          %s273 = scalar_select %p272, %s271, 127
          %s274 = smul.addr %s273, 8
          %s275 = scalar_lea.vmem %s1, %s274
          %s276 = smul.u32 32, %s16
        $region59: #{fop_mixer_forward.1} parent=31 // pred_fallthru
          _
        // Predicated region
        $region60: #{fop_mixer_forward.1} parent=31 // pred_check
          %p277 = pneg %p88
        $region61: #{fop_mixer_forward.1} parent=31 // pred_check_branch
          %279 = sbr.rel (%p277) target = $region63
        $region62: #{fop_mixer_forward.1} parent=31 // pred_region
          %s280 = smul.u32 32, %s16
          %p281 = scmp.lt.s32.totalorder %s280, 127
          %s282 = scalar_select %p281, %s280, 127
          %s283 = smul.addr %s282, 8
          %s284 = scalar_lea.vmem %s2, %s283
          %s285 = smul.u32 32, %s16
        $region63: #{fop_mixer_forward.1} parent=31 // pred_fallthru
          _
      $region32: #{fop_mixer_forward.1} parent=5 // pred_fallthru
        _
      %p286 = scmp.le.s32.totalorder 1, %s16
      %p287 = scmp.lt.s32.totalorder %s16, 5
      %p288 = pnand %p286, %p287
      %p289 = pneg %p288
      // Predicated region
      $region64: #{fop_mixer_forward.1} parent=5 // pred_check
        _
      $region65: #{fop_mixer_forward.1} parent=5 // pred_check_branch
        %291 = sbr.rel (%p288) target = $region67
      $region66: #{fop_mixer_forward.1} parent=5 // pred_region
        %s292 = ssub.s32 %s16, 1
        %s293 = sand.u32 %s29, 1
        %s294 = sand.u32 %s29, 1
        %s295 = smul.addr %s294, 32
        %s296 = scalar_lea.vmem [#allocation2], %s295
        // Predicated region
        $region68: #{fop_mixer_forward.1} parent=66 // pred_check
          %p297 = pneg %p42
        $region69: #{fop_mixer_forward.1} parent=66 // pred_check_branch
          %299 = sbr.rel (%p297) target = $region71
        $region70: #{fop_mixer_forward.1} parent=66 // pred_region
          _
        $region71: #{fop_mixer_forward.1} parent=66 // pred_fallthru
          _
        %s300 = sand.u32 %s29, 1
        %s301 = sand.u32 %s29, 1
        %s302 = smul.addr %s301, 32
        %s303 = scalar_lea.vmem [#allocation2], %s302
        %p304 = pneg %p42
        %p305 = pneg %p39
        %s306 = smul.u32 32, %s21
        %p307 = scmp.lt.s32.totalorder %s306, 127
        %s308 = scalar_select %p307, %s306, 127
        %s309 = smul.addr %s308, 8
        %s310 = scalar_lea.vmem %s1, %s309
        %p311 = pneg %p68
        %p312 = pneg %p65
        %s313 = smul.u32 32, %s21
        %p314 = scmp.lt.s32.totalorder %s313, 127
        %s315 = scalar_select %p314, %s313, 127
        %s316 = smul.addr %s315, 8
        %s317 = scalar_lea.vmem %s2, %s316
        %p318 = pneg %p94
        %p319 = pneg %p91
        %p320 = pneg %p115
        %p321 = pneg %p112
        %p322 = pneg %p136
        %p323 = pneg %p133
        %p324 = pneg %p157
        %p325 = pneg %p154
        %p326 = pneg %p178
        %p327 = pneg %p175
        %p328 = pneg %p204
        %p329 = pneg %p201
        %s330 = sand.u32 %s191, 1
        %s331 = scalar_lea.sflag [#allocation4], %s330
        %s332 = sand.u32 %s191, 1
        %s333 = smul.addr %s332, 2
        %s334 = scalar_lea.vmem [#allocation3], %s333
        %s335 = smul.u32 2, %s21
        %s336 = smul.u32 32, %s21
        %p337 = scmp.lt.s32.totalorder %s336, 127
        %s338 = scalar_select %p337, %s336, 127
        %s339 = smul.addr %s338, 8
        %s340 = scalar_lea.vmem %s1, %s339
        %s341 = smul.u32 32, %s21
        %s342 = smul.u32 32, %s21
        %p343 = scmp.lt.s32.totalorder %s342, 127
        %s344 = scalar_select %p343, %s342, 127
        %s345 = smul.addr %s344, 8
        %s346 = scalar_lea.vmem %s2, %s345
        %s347 = smul.u32 32, %s21
        %s348 = smul.u32 2, %s21
        %v349 = vld [vmem:[%s3] sm:$0xff]
        %v350 = vld [vmem:[%s3 + $0x8] sm:$0xff]
        %v351 = vld [vmem:[%s3 + $0x10] sm:$0xff]
        %v352 = vld [vmem:[%s3 + $0x18] sm:$0xff]
        %v353 = vld [vmem:[%s3 + $0x20] sm:$0xff]
        %v354 = vld [vmem:[%s3 + $0x28] sm:$0xff]
        %v355 = vld [vmem:[%s3 + $0x30] sm:$0xff]
        %v356 = vld [vmem:[%s3 + $0x38] sm:$0xff]
        %v357 = vld [vmem:[%s3 + $0x40] sm:$0xff]
        %v358 = vld [vmem:[%s3 + $0x48] sm:$0xff]
        %v359 = vld [vmem:[%s3 + $0x50] sm:$0xff]
        %v360 = vld [vmem:[%s340] sm:$0xff]
        %v361 = vld [vmem:[%s340 + $0x8] sm:$0xff]
        %v362 = vld [vmem:[%s340 + $0x10] sm:$0xff]
        %v363 = vld [vmem:[%s340 + $0x18] sm:$0xff]
        %v364 = vld [vmem:[%s340 + $0x20] sm:$0xff]
        %v365 = vld [vmem:[%s340 + $0x28] sm:$0xff]
        %v366 = vld [vmem:[%s340 + $0x30] sm:$0xff]
        %v367 = vld [vmem:[%s340 + $0x38] sm:$0xff]
        %v368 = vld [vmem:[%s340 + $0x40] sm:$0xff]
        %v369 = vld [vmem:[%s340 + $0x48] sm:$0xff]
        %v370 = vld [vmem:[%s340 + $0x50] sm:$0xff]
        %v371 = vld [vmem:[%s340 + $0x58] sm:$0xff]
        %v372 = vld [vmem:[%s340 + $0x60] sm:$0xff]
        %v373 = vld [vmem:[%s340 + $0x68] sm:$0xff]
        %v374 = vld [vmem:[%s340 + $0x70] sm:$0xff]
        %v375 = vld [vmem:[%s340 + $0x78] sm:$0xff]
        %v376 = vld [vmem:[%s340 + $0x80] sm:$0xff]
        %v377 = vld [vmem:[%s340 + $0x88] sm:$0xff]
        %v378 = vld [vmem:[%s340 + $0x90] sm:$0xff]
        %v379 = vld [vmem:[%s340 + $0x98] sm:$0xff]
        %v380 = vld [vmem:[%s340 + $0xa0] sm:$0xff]
        %v381 = vld [vmem:[%s340 + $0xa8] sm:$0xff]
        %v382 = vld [vmem:[%s340 + $0xb0] sm:$0xff]
        %v383 = vld [vmem:[%s340 + $0xb8] sm:$0xff]
        %v384 = vld [vmem:[%s340 + $0xc0] sm:$0xff]
        %v385 = vld [vmem:[%s340 + $0xc8] sm:$0xff]
        %v386 = vld [vmem:[%s340 + $0xd0] sm:$0xff]
        %v387 = vld [vmem:[%s340 + $0xd8] sm:$0xff]
        %v388 = vld [vmem:[%s340 + $0xe0] sm:$0xff]
        %v389 = vld [vmem:[%s340 + $0xe8] sm:$0xff]
        %v390 = vld [vmem:[%s340 + $0xf0] sm:$0xff]
        %v391 = vld [vmem:[%s340 + $0xf8] sm:$0xff]
        %v392 = vld [vmem:[%s4] sm:$0xff]
        %v393 = vld [vmem:[%s4 + $0x8] sm:$0xff]
        %v394 = vld [vmem:[%s4 + $0x10] sm:$0xff]
        %v395 = vld [vmem:[%s4 + $0x18] sm:$0xff]
        %v396 = vld [vmem:[%s4 + $0x20] sm:$0xff]
        %v397 = vld [vmem:[%s4 + $0x28] sm:$0xff]
        %v398 = vld [vmem:[%s4 + $0x30] sm:$0xff]
        %v399 = vld [vmem:[%s4 + $0x38] sm:$0xff]
        %v400 = vld [vmem:[%s4 + $0x40] sm:$0xff]
        %v401 = vld [vmem:[%s4 + $0x48] sm:$0xff]
        %v402 = vld [vmem:[%s4 + $0x50] sm:$0xff]
        %v403 = vld [vmem:[%s346] sm:$0xff]
        %v404 = vld [vmem:[%s346 + $0x8] sm:$0xff]
        %v405 = vld [vmem:[%s346 + $0x10] sm:$0xff]
        %v406 = vld [vmem:[%s346 + $0x18] sm:$0xff]
        %v407 = vld [vmem:[%s346 + $0x20] sm:$0xff]
        %v408 = vld [vmem:[%s346 + $0x28] sm:$0xff]
        %v409 = vld [vmem:[%s346 + $0x30] sm:$0xff]
        %v410 = vld [vmem:[%s346 + $0x38] sm:$0xff]
        %v411 = vld [vmem:[%s346 + $0x40] sm:$0xff]
        %v412 = vld [vmem:[%s346 + $0x48] sm:$0xff]
        %v413 = vld [vmem:[%s346 + $0x50] sm:$0xff]
        %v414 = vld [vmem:[%s346 + $0x58] sm:$0xff]
        %v415 = vld [vmem:[%s346 + $0x60] sm:$0xff]
        %v416 = vld [vmem:[%s346 + $0x68] sm:$0xff]
        %v417 = vld [vmem:[%s346 + $0x70] sm:$0xff]
        %v418 = vld [vmem:[%s346 + $0x78] sm:$0xff]
        %v419 = vld [vmem:[%s346 + $0x80] sm:$0xff]
        %v420 = vld [vmem:[%s346 + $0x88] sm:$0xff]
        %v421 = vld [vmem:[%s346 + $0x90] sm:$0xff]
        %v422 = vld [vmem:[%s346 + $0x98] sm:$0xff]
        %v423 = vld [vmem:[%s346 + $0xa0] sm:$0xff]
        %v424 = vld [vmem:[%s346 + $0xa8] sm:$0xff]
        %v425 = vld [vmem:[%s346 + $0xb0] sm:$0xff]
        %v426 = vld [vmem:[%s346 + $0xb8] sm:$0xff]
        %v427 = vld [vmem:[%s346 + $0xc0] sm:$0xff]
        %v428 = vld [vmem:[%s346 + $0xc8] sm:$0xff]
        %v429 = vld [vmem:[%s346 + $0xd0] sm:$0xff]
        %v430 = vld [vmem:[%s346 + $0xd8] sm:$0xff]
        %v431 = vld [vmem:[%s346 + $0xe0] sm:$0xff]
        %v432 = vld [vmem:[%s346 + $0xe8] sm:$0xff]
        %v433 = vld [vmem:[%s346 + $0xf0] sm:$0xff]
        %v434 = vld [vmem:[%s346 + $0xf8] sm:$0xff]
        %vm435 = vcmask 162816
        %v437 = vsel %vm435, %v392, 0
        %v440 = vsel %vm435, %v393, 0
        %v443 = vsel %vm435, %v394, 0
        %v446 = vsel %vm435, %v395, 0
        %v449 = vsel %vm435, %v396, 0
        %v452 = vsel %vm435, %v397, 0
        %v455 = vsel %vm435, %v398, 0
        %v458 = vsel %vm435, %v399, 0
        %v461 = vsel %vm435, %v400, 0
        %v464 = vsel %vm435, %v401, 0
        %v467 = vsel %vm435, %v402, 0
        %v470 = vsel %vm435, %v403, 0
        %v473 = vsel %vm435, %v404, 0
        %v476 = vsel %vm435, %v405, 0
        %v479 = vsel %vm435, %v406, 0
        %v482 = vsel %vm435, %v407, 0
        %v485 = vsel %vm435, %v408, 0
        %v488 = vsel %vm435, %v409, 0
        %v491 = vsel %vm435, %v410, 0
        %v494 = vsel %vm435, %v411, 0
        %v497 = vsel %vm435, %v412, 0
        %v500 = vsel %vm435, %v413, 0
        %v503 = vsel %vm435, %v414, 0
        %v506 = vsel %vm435, %v415, 0
        %v509 = vsel %vm435, %v416, 0
        %v512 = vsel %vm435, %v417, 0
        %v515 = vsel %vm435, %v418, 0
        %v518 = vsel %vm435, %v419, 0
        %v521 = vsel %vm435, %v420, 0
        %v524 = vsel %vm435, %v421, 0
        %v527 = vsel %vm435, %v422, 0
        %v530 = vsel %vm435, %v423, 0
        %v533 = vsel %vm435, %v424, 0
        %v536 = vsel %vm435, %v425, 0
        %v539 = vsel %vm435, %v426, 0
        %v542 = vsel %vm435, %v427, 0
        %v545 = vsel %vm435, %v428, 0
        %v548 = vsel %vm435, %v429, 0
        %v551 = vsel %vm435, %v430, 0
        %v554 = vsel %vm435, %v431, 0
        %v557 = vsel %vm435, %v432, 0
        %v560 = vsel %vm435, %v433, 0
        %v563 = vsel %vm435, %v434, 0
        %565 = vmatprep.subr.mxu0 0.0
        %566 = vmatpush1.xpose.msra.mxu0 %v470
        %567 = vmatprep.subr.mxu0 0.0
        %568 = vmatpush1.xpose.msra.mxu0 %v473
        %569 = vmatprep.subr.mxu0 0.0
        %570 = vmatpush1.xpose.msra.mxu0 %v476
        %571 = vmatprep.subr.mxu0 0.0
        %572 = vmatpush1.xpose.msra.mxu0 %v479
        %573 = vmatprep.subr.mxu0 0.0
        %574 = vmatpush1.xpose.msra.mxu0 %v482
        %575 = vmatprep.subr.mxu0 0.0
        %576 = vmatpush1.xpose.msra.mxu0 %v485
        %577 = vmatprep.subr.mxu0 0.0
        %578 = vmatpush1.xpose.msra.mxu0 %v488
        %579 = vmatprep.subr.mxu0 0.0
        %580 = vmatpush1.xpose.msra.mxu0 %v491
        %581 = vmatprep.subr.mxu0 0.0
        %582 = vmatpush1.xpose.msra.mxu0 %v494
        %583 = vmatprep.subr.mxu0 0.0
        %584 = vmatpush1.xpose.msra.mxu0 %v497
        %585 = vmatprep.subr.mxu0 0.0
        %586 = vmatpush1.xpose.msra.mxu0 %v500
        %587 = vmatprep.subr.mxu0 0.0
        %588 = vmatpush1.xpose.msra.mxu0 %v503
        %589 = vmatprep.subr.mxu0 0.0
        %590 = vmatpush1.xpose.msra.mxu0 %v506
        %591 = vmatprep.subr.mxu0 0.0
        %592 = vmatpush1.xpose.msra.mxu0 %v509
        %593 = vmatprep.subr.mxu0 0.0
        %594 = vmatpush1.xpose.msra.mxu0 %v512
        %595 = vmatprep.subr.mxu0 0.0
        %596 = vmatpush1.xpose.msra.mxu0 %v515
        %597 = vmatprep.subr.mxu0 0.0
        %598 = vmatpush1.xpose.msra.mxu0 %v518
        %599 = vmatprep.subr.mxu0 0.0
        %600 = vmatpush1.xpose.msra.mxu0 %v521
        %601 = vmatprep.subr.mxu0 0.0
        %602 = vmatpush1.xpose.msra.mxu0 %v524
        %603 = vmatprep.subr.mxu0 0.0
        %604 = vmatpush1.xpose.msra.mxu0 %v527
        %605 = vmatprep.subr.mxu0 0.0
        %606 = vmatpush1.xpose.msra.mxu0 %v530
        %607 = vmatprep.subr.mxu0 0.0
        %608 = vmatpush1.xpose.msra.mxu0 %v533
        %609 = vmatprep.subr.mxu0 0.0
        %610 = vmatpush1.xpose.msra.mxu0 %v536
        %611 = vmatprep.subr.mxu0 0.0
        %612 = vmatpush1.xpose.msra.mxu0 %v539
        %613 = vmatprep.subr.mxu0 0.0
        %614 = vmatpush1.xpose.msra.mxu0 %v542
        %615 = vmatprep.subr.mxu0 0.0
        %616 = vmatpush1.xpose.msra.mxu0 %v545
        %617 = vmatprep.subr.mxu0 0.0
        %618 = vmatpush1.xpose.msra.mxu0 %v548
        %619 = vmatprep.subr.mxu0 0.0
        %620 = vmatpush1.xpose.msra.mxu0 %v551
        %621 = vmatprep.subr.mxu0 0.0
        %622 = vmatpush1.xpose.msra.mxu0 %v554
        %623 = vmatprep.subr.mxu0 0.0
        %624 = vmatpush1.xpose.msra.mxu0 %v557
        %625 = vmatprep.subr.mxu0 0.0
        %626 = vmatpush1.xpose.msra.mxu0 %v560
        %627 = vmatprep.subr.mxu0 0.0
        %628 = vmatpush1.xpose.msra.mxu0 %v563
        %629 = vmatprep.mubr.f32.mxu0 0.0
        %630 = vmatmul.mubr.f32.gmra.mrb[0].mxu0 %v437
        %v631 = vpop.f32.mrb[0].mxu0
        %v632 = vadd.f32 0.0, %v631
        %v633 = vpop.f32.mrb[0].mxu0
        %v634 = vadd.f32 0.0, %v633
        %635 = vmatprep.mubr.f32.mxu0 0.0
        %636 = vmatmul.mubr.f32.gmra.mrb[0].mxu0 %v440
        %v637 = vpop.f32.mrb[0].mxu0
        %v638 = vadd.f32 0.0, %v637
        %v639 = vpop.f32.mrb[0].mxu0
        %v640 = vadd.f32 0.0, %v639
        %641 = vmatprep.mubr.f32.mxu0 0.0
        %642 = vmatmul.mubr.f32.gmra.mrb[0].mxu0 %v443
        %v643 = vpop.f32.mrb[0].mxu0
        %v644 = vadd.f32 0.0, %v643
        %v645 = vpop.f32.mrb[0].mxu0
        %v646 = vadd.f32 0.0, %v645
        %647 = vmatprep.mubr.f32.mxu0 0.0
        %648 = vmatmul.mubr.f32.gmra.mrb[0].mxu0 %v446
        %v649 = vpop.f32.mrb[0].mxu0
        %v650 = vadd.f32 0.0, %v649
        %v651 = vpop.f32.mrb[0].mxu0
        %v652 = vadd.f32 0.0, %v651
        %653 = vmatprep.mubr.f32.mxu0 0.0
        %654 = vmatmul.mubr.f32.gmra.mrb[0].mxu0 %v449
        %v655 = vpop.f32.mrb[0].mxu0
        %v656 = vadd.f32 0.0, %v655
        %v657 = vpop.f32.mrb[0].mxu0
        %v658 = vadd.f32 0.0, %v657
        %659 = vmatprep.mubr.f32.mxu0 0.0
        %660 = vmatmul.mubr.f32.gmra.mrb[0].mxu0 %v452
        %v661 = vpop.f32.mrb[0].mxu0
        %v662 = vadd.f32 0.0, %v661
        %v663 = vpop.f32.mrb[0].mxu0
        %v664 = vadd.f32 0.0, %v663
        %665 = vmatprep.mubr.f32.mxu0 0.0
        %666 = vmatmul.mubr.f32.gmra.mrb[0].mxu0 %v455
        %v667 = vpop.f32.mrb[0].mxu0
        %v668 = vadd.f32 0.0, %v667
        %v669 = vpop.f32.mrb[0].mxu0
        %v670 = vadd.f32 0.0, %v669
        %671 = vmatprep.mubr.f32.mxu0 0.0
        %672 = vmatmul.mubr.f32.gmra.mrb[0].mxu0 %v458
        %v673 = vpop.f32.mrb[0].mxu0
        %v674 = vadd.f32 0.0, %v673
        %v675 = vpop.f32.mrb[0].mxu0
        %v676 = vadd.f32 0.0, %v675
        %677 = vmatprep.mubr.f32.mxu0 0.0
        %678 = vmatmul.mubr.f32.gmra.mrb[0].mxu0 %v461
        %v679 = vpop.f32.mrb[0].mxu0
        %v680 = vadd.f32 0.0, %v679
        %v681 = vpop.f32.mrb[0].mxu0
        %v682 = vadd.f32 0.0, %v681
        %683 = vmatprep.mubr.f32.mxu0 0.0
        %684 = vmatmul.mubr.f32.gmra.mrb[0].mxu0 %v464
        %v685 = vpop.f32.mrb[0].mxu0
        %v686 = vadd.f32 0.0, %v685
        %v687 = vpop.f32.mrb[0].mxu0
        %v688 = vadd.f32 0.0, %v687
        %689 = vmatprep.mubr.f32.mxu0 0.0
        %690 = vmatmul.mubr.f32.gmra.mrb[0].mxu0 %v467
        %v691 = vpop.f32.mrb[0].mxu0
        %v692 = vadd.f32 0.0, %v691
        %v693 = vpop.f32.mrb[0].mxu0
        %v694 = vadd.f32 0.0, %v693
        %695 = vdwg.mxu0
        %vm696 = vcmask 261120
        %v698 = vsel %vm696, %v349, 0
        %v701 = vsel %vm696, %v350, 0
        %v704 = vsel %vm696, %v351, 0
        %v707 = vsel %vm696, %v352, 0
        %v710 = vsel %vm696, %v353, 0
        %v713 = vsel %vm696, %v354, 0
        %v716 = vsel %vm696, %v355, 0
        %v719 = vsel %vm696, %v356, 0
        %v722 = vsel %vm696, %v357, 0
        %v725 = vsel %vm696, %v358, 0
        %v728 = vsel %vm696, %v359, 0
        %v731 = vsel %vm696, %v360, 0
        %v734 = vsel %vm696, %v361, 0
        %v737 = vsel %vm696, %v362, 0
        %v740 = vsel %vm696, %v363, 0
        %v743 = vsel %vm696, %v364, 0
        %v746 = vsel %vm696, %v365, 0
        %v749 = vsel %vm696, %v366, 0
        %v752 = vsel %vm696, %v367, 0
        %v755 = vsel %vm696, %v368, 0
        %v758 = vsel %vm696, %v369, 0
        %v761 = vsel %vm696, %v370, 0
        %v764 = vsel %vm696, %v371, 0
        %v767 = vsel %vm696, %v372, 0
        %v770 = vsel %vm696, %v373, 0
        %v773 = vsel %vm696, %v374, 0
        %v776 = vsel %vm696, %v375, 0
        %v779 = vsel %vm696, %v376, 0
        %v782 = vsel %vm696, %v377, 0
        %v785 = vsel %vm696, %v378, 0
        %v788 = vsel %vm696, %v379, 0
        %v791 = vsel %vm696, %v380, 0
        %v794 = vsel %vm696, %v381, 0
        %v797 = vsel %vm696, %v382, 0
        %v800 = vsel %vm696, %v383, 0
        %v803 = vsel %vm696, %v384, 0
        %v806 = vsel %vm696, %v385, 0
        %v809 = vsel %vm696, %v386, 0
        %v812 = vsel %vm696, %v387, 0
        %v815 = vsel %vm696, %v388, 0
        %v818 = vsel %vm696, %v389, 0
        %v821 = vsel %vm696, %v390, 0
        %v824 = vsel %vm696, %v391, 0
        %826 = vmatprep.subr.mxu0 0.0
        %827 = vmatpush1.xpose.msra.mxu0 %v731
        %828 = vmatprep.subr.mxu0 0.0
        %829 = vmatpush1.xpose.msra.mxu0 %v734
        %830 = vmatprep.subr.mxu0 0.0
        %831 = vmatpush1.xpose.msra.mxu0 %v737
        %832 = vmatprep.subr.mxu0 0.0
        %833 = vmatpush1.xpose.msra.mxu0 %v740
        %834 = vmatprep.subr.mxu0 0.0
        %835 = vmatpush1.xpose.msra.mxu0 %v743
        %836 = vmatprep.subr.mxu0 0.0
        %837 = vmatpush1.xpose.msra.mxu0 %v746
        %838 = vmatprep.subr.mxu0 0.0
        %839 = vmatpush1.xpose.msra.mxu0 %v749
        %840 = vmatprep.subr.mxu0 0.0
        %841 = vmatpush1.xpose.msra.mxu0 %v752
        %842 = vmatprep.subr.mxu0 0.0
        %843 = vmatpush1.xpose.msra.mxu0 %v755
        %844 = vmatprep.subr.mxu0 0.0
        %845 = vmatpush1.xpose.msra.mxu0 %v758
        %846 = vmatprep.subr.mxu0 0.0
        %847 = vmatpush1.xpose.msra.mxu0 %v761
        %848 = vmatprep.subr.mxu0 0.0
        %849 = vmatpush1.xpose.msra.mxu0 %v764
        %850 = vmatprep.subr.mxu0 0.0
        %851 = vmatpush1.xpose.msra.mxu0 %v767
        %852 = vmatprep.subr.mxu0 0.0
        %853 = vmatpush1.xpose.msra.mxu0 %v770
        %854 = vmatprep.subr.mxu0 0.0
        %855 = vmatpush1.xpose.msra.mxu0 %v773
        %856 = vmatprep.subr.mxu0 0.0
        %857 = vmatpush1.xpose.msra.mxu0 %v776
        %858 = vmatprep.subr.mxu0 0.0
        %859 = vmatpush1.xpose.msra.mxu0 %v779
        %860 = vmatprep.subr.mxu0 0.0
        %861 = vmatpush1.xpose.msra.mxu0 %v782
        %862 = vmatprep.subr.mxu0 0.0
        %863 = vmatpush1.xpose.msra.mxu0 %v785
        %864 = vmatprep.subr.mxu0 0.0
        %865 = vmatpush1.xpose.msra.mxu0 %v788
        %866 = vmatprep.subr.mxu0 0.0
        %867 = vmatpush1.xpose.msra.mxu0 %v791
        %868 = vmatprep.subr.mxu0 0.0
        %869 = vmatpush1.xpose.msra.mxu0 %v794
        %870 = vmatprep.subr.mxu0 0.0
        %871 = vmatpush1.xpose.msra.mxu0 %v797
        %872 = vmatprep.subr.mxu0 0.0
        %873 = vmatpush1.xpose.msra.mxu0 %v800
        %874 = vmatprep.subr.mxu0 0.0
        %875 = vmatpush1.xpose.msra.mxu0 %v803
        %876 = vmatprep.subr.mxu0 0.0
        %877 = vmatpush1.xpose.msra.mxu0 %v806
        %878 = vmatprep.subr.mxu0 0.0
        %879 = vmatpush1.xpose.msra.mxu0 %v809
        %880 = vmatprep.subr.mxu0 0.0
        %881 = vmatpush1.xpose.msra.mxu0 %v812
        %882 = vmatprep.subr.mxu0 0.0
        %883 = vmatpush1.xpose.msra.mxu0 %v815
        %884 = vmatprep.subr.mxu0 0.0
        %885 = vmatpush1.xpose.msra.mxu0 %v818
        %886 = vmatprep.subr.mxu0 0.0
        %887 = vmatpush1.xpose.msra.mxu0 %v821
        %888 = vmatprep.subr.mxu0 0.0
        %889 = vmatpush1.xpose.msra.mxu0 %v824
        %890 = vmatprep.mubr.f32.mxu0 0.0
        %891 = vmatmul.mubr.f32.gmra.mrb[0].mxu0 %v698
        %v892 = vpop.f32.mrb[0].mxu0
        %v893 = vadd.f32 %v632, %v892
        %v894 = vpop.f32.mrb[0].mxu0
        %v895 = vadd.f32 %v634, %v894
        %896 = vmatprep.mubr.f32.mxu0 0.0
        %897 = vmatmul.mubr.f32.gmra.mrb[0].mxu0 %v701
        %v898 = vpop.f32.mrb[0].mxu0
        %v899 = vadd.f32 %v638, %v898
        %v900 = vpop.f32.mrb[0].mxu0
        %v901 = vadd.f32 %v640, %v900
        %902 = vmatprep.mubr.f32.mxu0 0.0
        %903 = vmatmul.mubr.f32.gmra.mrb[0].mxu0 %v704
        %v904 = vpop.f32.mrb[0].mxu0
        %v905 = vadd.f32 %v644, %v904
        %v906 = vpop.f32.mrb[0].mxu0
        %v907 = vadd.f32 %v646, %v906
        %908 = vmatprep.mubr.f32.mxu0 0.0
        %909 = vmatmul.mubr.f32.gmra.mrb[0].mxu0 %v707
        %v910 = vpop.f32.mrb[0].mxu0
        %v911 = vadd.f32 %v650, %v910
        %v912 = vpop.f32.mrb[0].mxu0
        %v913 = vadd.f32 %v652, %v912
        %914 = vmatprep.mubr.f32.mxu0 0.0
        %915 = vmatmul.mubr.f32.gmra.mrb[0].mxu0 %v710
        %v916 = vpop.f32.mrb[0].mxu0
        %v917 = vadd.f32 %v656, %v916
        %v918 = vpop.f32.mrb[0].mxu0
        %v919 = vadd.f32 %v658, %v918
        %920 = vmatprep.mubr.f32.mxu0 0.0
        %921 = vmatmul.mubr.f32.gmra.mrb[0].mxu0 %v713
        %v922 = vpop.f32.mrb[0].mxu0
        %v923 = vadd.f32 %v662, %v922
        %v924 = vpop.f32.mrb[0].mxu0
        %v925 = vadd.f32 %v664, %v924
        %926 = vmatprep.mubr.f32.mxu0 0.0
        %927 = vmatmul.mubr.f32.gmra.mrb[0].mxu0 %v716
        %v928 = vpop.f32.mrb[0].mxu0
        %v929 = vadd.f32 %v668, %v928
        %v930 = vpop.f32.mrb[0].mxu0
        %v931 = vadd.f32 %v670, %v930
        %932 = vmatprep.mubr.f32.mxu0 0.0
        %933 = vmatmul.mubr.f32.gmra.mrb[0].mxu0 %v719
        %v934 = vpop.f32.mrb[0].mxu0
        %v935 = vadd.f32 %v674, %v934
        %v936 = vpop.f32.mrb[0].mxu0
        %v937 = vadd.f32 %v676, %v936
        %938 = vmatprep.mubr.f32.mxu0 0.0
        %939 = vmatmul.mubr.f32.gmra.mrb[0].mxu0 %v722
        %v940 = vpop.f32.mrb[0].mxu0
        %v941 = vadd.f32 %v680, %v940
        %v942 = vpop.f32.mrb[0].mxu0
        %v943 = vadd.f32 %v682, %v942
        %944 = vmatprep.mubr.f32.mxu0 0.0
        %945 = vmatmul.mubr.f32.gmra.mrb[0].mxu0 %v725
        %v946 = vpop.f32.mrb[0].mxu0
        %v947 = vadd.f32 %v686, %v946
        %v948 = vpop.f32.mrb[0].mxu0
        %v949 = vadd.f32 %v688, %v948
        %950 = vmatprep.mubr.f32.mxu0 0.0
        %951 = vmatmul.mubr.f32.gmra.mrb[0].mxu0 %v728
        %v952 = vpop.f32.mrb[0].mxu0
        %v953 = vadd.f32 %v692, %v952
        %v954 = vpop.f32.mrb[0].mxu0
        %v955 = vadd.f32 %v694, %v954
        %956 = vdwg.mxu0
        %v957 = vld [vmem:[%s5] sm:$0xff]
        %v958 = vld [vmem:[%s5 + $0x8] sm:$0xff]
        %v959 = vld [vmem:[%s5 + $0x10] sm:$0xff]
        %v960 = vld [vmem:[%s5 + $0x18] sm:$0xff]
        %v961 = vld [vmem:[%s5 + $0x20] sm:$0xff]
        %v962 = vld [vmem:[%s5 + $0x28] sm:$0xff]
        %v963 = vld [vmem:[%s5 + $0x30] sm:$0xff]
        %v964 = vld [vmem:[%s5 + $0x38] sm:$0xff]
        %v965 = vld [vmem:[%s5 + $0x40] sm:$0xff]
        %v966 = vld [vmem:[%s5 + $0x48] sm:$0xff]
        %v967 = vld [vmem:[%s5 + $0x50] sm:$0xff]
        %969 = vset.pattern.permute.xlu0 0
        %970 = vperm.xlu0 %969, %v957
        %v971 = vpop.permute.xlu0 %970
        %974 = vset.pattern.permute.xlu0 0
        %975 = vperm.xlu0 %974, %v958
        %v976 = vpop.permute.xlu0 %975
        %979 = vset.pattern.permute.xlu0 0
        %980 = vperm.xlu0 %979, %v959
        %v981 = vpop.permute.xlu0 %980
        %984 = vset.pattern.permute.xlu0 0
        %985 = vperm.xlu0 %984, %v960
        %v986 = vpop.permute.xlu0 %985
        %989 = vset.pattern.permute.xlu0 0
        %990 = vperm.xlu0 %989, %v961
        %v991 = vpop.permute.xlu0 %990
        %994 = vset.pattern.permute.xlu0 0
        %995 = vperm.xlu0 %994, %v962
        %v996 = vpop.permute.xlu0 %995
        %999 = vset.pattern.permute.xlu0 0
        %1000 = vperm.xlu0 %999, %v963
        %v1001 = vpop.permute.xlu0 %1000
        %1004 = vset.pattern.permute.xlu0 0
        %1005 = vperm.xlu0 %1004, %v964
        %v1006 = vpop.permute.xlu0 %1005
        %1009 = vset.pattern.permute.xlu0 0
        %1010 = vperm.xlu0 %1009, %v965
        %v1011 = vpop.permute.xlu0 %1010
        %1014 = vset.pattern.permute.xlu0 0
        %1015 = vperm.xlu0 %1014, %v966
        %v1016 = vpop.permute.xlu0 %1015
        %1019 = vset.pattern.permute.xlu0 0
        %1020 = vperm.xlu0 %1019, %v967
        %v1021 = vpop.permute.xlu0 %1020
        %v1023 = vadd.f32 %v893, %v971
        %v1024 = vadd.f32 %v895, %v971
        %v1025 = vadd.f32 %v899, %v976
        %v1026 = vadd.f32 %v901, %v976
        %v1027 = vadd.f32 %v905, %v981
        %v1028 = vadd.f32 %v907, %v981
        %v1029 = vadd.f32 %v911, %v986
        %v1030 = vadd.f32 %v913, %v986
        %v1031 = vadd.f32 %v917, %v991
        %v1032 = vadd.f32 %v919, %v991
        %v1033 = vadd.f32 %v923, %v996
        %v1034 = vadd.f32 %v925, %v996
        %v1035 = vadd.f32 %v929, %v1001
        %v1036 = vadd.f32 %v931, %v1001
        %v1037 = vadd.f32 %v935, %v1006
        %v1038 = vadd.f32 %v937, %v1006
        %v1039 = vadd.f32 %v941, %v1011
        %v1040 = vadd.f32 %v943, %v1011
        %v1041 = vadd.f32 %v947, %v1016
        %v1042 = vadd.f32 %v949, %v1016
        %v1043 = vadd.f32 %v953, %v1021
        %v1044 = vadd.f32 %v955, %v1021
        %v1045 = vand.u32 2147483647, %v1023
        %v1046 = vand.u32 2147483647, %v1024
        %v1047 = vand.u32 2147483647, %v1025
        %v1048 = vand.u32 2147483647, %v1026
        %v1049 = vadd.f32 %v1045, 1e-10
        %v1050 = vadd.f32 %v1046, 1e-10
        %v1051 = vadd.f32 %v1047, 1e-10
        %v1052 = vadd.f32 %v1048, 1e-10
        %v1053 = vxor.u32 %v1027, 2147483648
        %v1054 = vxor.u32 %v1028, 2147483648
        %v1055 = vxor.u32 %v1029, 2147483648
        %v1056 = vxor.u32 %v1030, 2147483648
        %v1057 = vmul.f32 %v1053, 1.442695
        %v1058 = vpow.pop %v1057
        %v1059 = vmul.f32 %v1054, 1.442695
        %v1060 = vpow.pop %v1059
        %v1061 = vmul.f32 %v1055, 1.442695
        %v1062 = vpow.pop %v1061
        %v1063 = vmul.f32 %v1056, 1.442695
        %v1064 = vpow.pop %v1063
        %v1065 = vadd.f32 %v1058, 1.0
        %v1066 = vadd.f32 %v1060, 1.0
        %v1067 = vadd.f32 %v1062, 1.0
        %v1068 = vadd.f32 %v1064, 1.0
        %v1069 = vrcp.pop %v1065
        %v1070 = vmul.f32 1.0, %v1069
        %v1071 = vrcp.pop %v1066
        %v1072 = vmul.f32 1.0, %v1071
        %v1073 = vrcp.pop %v1067
        %v1074 = vmul.f32 1.0, %v1073
        %v1075 = vrcp.pop %v1068
        %v1076 = vmul.f32 1.0, %v1075
        %v1077 = vxor.u32 %v1031, 2147483648
        %v1078 = vxor.u32 %v1032, 2147483648
        %v1079 = vxor.u32 %v1033, 2147483648
        %v1080 = vxor.u32 %v1034, 2147483648
        %v1081 = vmul.f32 %v1077, 1.442695
        %v1082 = vpow.pop %v1081
        %v1083 = vmul.f32 %v1078, 1.442695
        %v1084 = vpow.pop %v1083
        %v1085 = vmul.f32 %v1079, 1.442695
        %v1086 = vpow.pop %v1085
        %v1087 = vmul.f32 %v1080, 1.442695
        %v1088 = vpow.pop %v1087
        %v1089 = vadd.f32 %v1082, 1.0
        %v1090 = vadd.f32 %v1084, 1.0
        %v1091 = vadd.f32 %v1086, 1.0
        %v1092 = vadd.f32 %v1088, 1.0
        %v1093 = vrcp.pop %v1089
        %v1094 = vmul.f32 1.0, %v1093
        %v1095 = vrcp.pop %v1090
        %v1096 = vmul.f32 1.0, %v1095
        %v1097 = vrcp.pop %v1091
        %v1098 = vmul.f32 1.0, %v1097
        %v1099 = vrcp.pop %v1092
        %v1100 = vmul.f32 1.0, %v1099
        %v1101 = vmul.f32 %v1049, %v1070
        %v1102 = vmul.f32 %v1050, %v1072
        %v1103 = vmul.f32 %v1051, %v1074
        %v1104 = vmul.f32 %v1052, %v1076
        %v1105 = vmul.f32 %v1101, %v1094
        %v1106 = vmul.f32 %v1102, %v1096
        %v1107 = vmul.f32 %v1103, %v1098
        %v1108 = vmul.f32 %v1104, %v1100
        %v1109 = vadd.f32 %v1105, %v1107
        %v1110 = vadd.f32 %v1106, %v1108
        %v1111 = vmax.f32 %v1035, 0.0
        %v1112 = vmax.f32 %v1036, 0.0
        %v1113 = vmax.f32 %v1037, 0.0
        %v1114 = vmax.f32 %v1038, 0.0
        %v1115 = vmax.f32 %v1039, 0.0
        %v1116 = vmax.f32 %v1040, 0.0
        %v1117 = vmax.f32 %v1041, 0.0
        %v1118 = vmax.f32 %v1042, 0.0
        %v1119 = vld [vmem:[%s6] sm:$0xff]
        %v1120 = vld [vmem:[%s6 + $0x8] sm:$0xff]
        %v1121 = vld [vmem:[%s6 + $0x10] sm:$0xff]
        %v1122 = vld [vmem:[%s6 + $0x18] sm:$0xff]
        %1124 = vset.pattern.permute.xlu0 0
        %1125 = vperm.xlu0 %1124, %v1119
        %v1126 = vpop.permute.xlu0 %1125
        %1129 = vset.pattern.permute.xlu0 0
        %1130 = vperm.xlu0 %1129, %v1120
        %v1131 = vpop.permute.xlu0 %1130
        %1134 = vset.pattern.permute.xlu0 0
        %1135 = vperm.xlu0 %1134, %v1121
        %v1136 = vpop.permute.xlu0 %1135
        %1139 = vset.pattern.permute.xlu0 0
        %1140 = vperm.xlu0 %1139, %v1122
        %v1141 = vpop.permute.xlu0 %1140
        %v1143 = vmul.f32 %v1111, %v1126
        %v1144 = vmul.f32 %v1112, %v1126
        %v1145 = vmul.f32 %v1113, %v1131
        %v1146 = vmul.f32 %v1114, %v1131
        %v1147 = vmul.f32 %v1115, %v1136
        %v1148 = vmul.f32 %v1116, %v1136
        %v1149 = vmul.f32 %v1117, %v1141
        %v1150 = vmul.f32 %v1118, %v1141
        %v1151 = vadd.f32 %v1143, %v1145
        %v1152 = vadd.f32 %v1151, %v1147
        %v1153 = vadd.f32 %v1152, %v1149
        %v1154 = vrot.slane %v1153, 4
        %v1155 = vadd.f32 %v1153, %v1154
        %v1156 = vrot.slane %v1155, 2
        %v1157 = vadd.f32 %v1155, %v1156
        %v1158 = vrot.slane %v1157, 1
        %v1159 = vadd.f32 %v1157, %v1158
        %v1160 = vadd.f32 %v1144, %v1146
        %v1161 = vadd.f32 %v1160, %v1148
        %v1162 = vadd.f32 %v1161, %v1150
        %v1163 = vrot.slane %v1162, 4
        %v1164 = vadd.f32 %v1162, %v1163
        %v1165 = vrot.slane %v1164, 2
        %v1166 = vadd.f32 %v1164, %v1165
        %v1167 = vrot.slane %v1166, 1
        %v1168 = vadd.f32 %v1166, %v1167
        %v1169 = vadd.f32 %v1159, %v1043
        %v1170 = vadd.f32 %v1168, %v1044
        %v1171 = vld [vmem:[%s296] sm:$0xff]
        %v1172 = vld [vmem:[%s296 + $0x8] sm:$0xff]
        %v1173 = vld [vmem:[%s296 + $0x10] sm:$0xff]
        %v1174 = vld [vmem:[%s296 + $0x18] sm:$0xff]
        %v1175 = vsub.f32 %v1171, %v1173
        %v1176 = vsub.f32 %v1172, %v1174
        %v1177 = vmul.f32 %v1175, %v1109
        %v1178 = vmul.f32 %v1176, %v1110
        %v1179 = vrot.slane %v1177, 4
        %v1180 = vadd.f32 %v1177, %v1179
        %v1181 = vrot.slane %v1180, 2
        %v1182 = vadd.f32 %v1180, %v1181
        %v1183 = vrot.slane %v1182, 1
        %v1184 = vadd.f32 %v1182, %v1183
        %v1185 = vrot.slane %v1178, 4
        %v1186 = vadd.f32 %v1178, %v1185
        %v1187 = vrot.slane %v1186, 2
        %v1188 = vadd.f32 %v1186, %v1187
        %v1189 = vrot.slane %v1188, 1
        %v1190 = vadd.f32 %v1188, %v1189
        %v1191 = vrot.slane %v1171, 4
        %v1192 = vadd.f32 %v1171, %v1191
        %v1193 = vrot.slane %v1192, 2
        %v1194 = vadd.f32 %v1192, %v1193
        %v1195 = vrot.slane %v1194, 1
        %v1196 = vadd.f32 %v1194, %v1195
        %v1197 = vrot.slane %v1172, 4
        %v1198 = vadd.f32 %v1172, %v1197
        %v1199 = vrot.slane %v1198, 2
        %v1200 = vadd.f32 %v1198, %v1199
        %v1201 = vrot.slane %v1200, 1
        %v1202 = vadd.f32 %v1200, %v1201
        %v1203 = vadd.f32 %v1184, %v1196
        %v1204 = vadd.f32 %v1190, %v1202
        %v1205 = vadd.f32 %v1203, %v1169
        %v1206 = vadd.f32 %v1204, %v1170
        %v1209 = vcombine.low %v1205, %v1206
        %v1211 = vunpack.c.l.s4 1966171168
        %v1212 = vunpack.c.0.s8 %v1211
        %v1213 = vlaneseq
        %v1214 = vshrl.u32 %v1213, 7
        %v1215 = vsub.s32 %v1212, %v1214
        %v1216 = vrot.slane %v1209, %v1215
        %v1218 = vunpack.c.l.s4 1966171168
        %v1219 = vunpack.c.0.s8 %v1218
        %v1220 = vlaneseq
        %v1221 = vshrl.u32 %v1220, 7
        %v1222 = vsub.s32 %v1219, %v1221
        %v1223 = vrot.slane %v1216, %v1222
        %v1225 = vlaneseq
        %vm1226 = vcmp.ge.s32.totalorder %v1225, 0
        %vm1227 = vcmp.lt.s32.totalorder %v1225, 256
        %vm1228 = vmand %vm1226, %vm1227
        %1229 = vst.msk [vmem:[%s334] sm:$0x3] %vm1228, %v1223
        %s1230 = sand.u32 %s191, 1
        %s1231 = scalar_lea.sflag [#allocation4], %s1230
        %s1232 = sand.u32 %s191, 1
        %s1233 = smul.addr %s1232, 2
        %s1234 = scalar_lea.vmem [#allocation3], %s1233
        // Predicated region
        $region72: #{fop_mixer_forward.1} parent=66 // pred_check
          %p1235 = pneg %p201
        $region73: #{fop_mixer_forward.1} parent=66 // pred_check_branch
          %1237 = sbr.rel (%p1235) target = $region75
        $region74: #{fop_mixer_forward.1} parent=66 // pred_region
          %s1238 = smul.u32 2, %s21
          %s1240 = ssub.s32 32, 32
          %1241 = vsyncadd %s1231, %s1240
          %s1242 = smul.addr %s1238, 16
          %s1243 = scalar_lea.hbm %s7, %s1242
          %s1245 = sshll.u32 %s1234, 4
          %s1246 = int_to_ptr.vmem [resolvable:$true] %s1245
          %1248 = dma.vmem_to_hbm [thread:$0]  %s1246, 32, %s1243, %s1231
        $region75: #{fop_mixer_forward.1} parent=66 // pred_fallthru
          _
      $region67: #{fop_mixer_forward.1} parent=5 // pred_fallthru
        _
      %p1249 = scmp.le.s32.totalorder 2, %s16
      // Predicated region
      $region76: #{fop_mixer_forward.1} parent=5 // pred_check
        %p1250 = pneg %p1249
      $region77: #{fop_mixer_forward.1} parent=5 // pred_check_branch
        %1252 = sbr.rel (%p1250) target = $region79
      $region78: #{fop_mixer_forward.1} parent=5 // pred_region
        %s1253 = ssub.s32 %s16, 2
        // Predicated region
        $region80: #{fop_mixer_forward.1} parent=78 // pred_check
          %p1254 = pneg %p207
        $region81: #{fop_mixer_forward.1} parent=78 // pred_check_branch
          %1256 = sbr.rel (%p1254) target = $region83
        $region82: #{fop_mixer_forward.1} parent=78 // pred_region
          %s1257 = sand.u32 %s192, 1
          %s1258 = scalar_lea.sflag [#allocation4], %s1257
          %s1259 = sand.u32 %s192, 1
          %s1260 = smul.addr %s1259, 2
          %s1261 = scalar_lea.vmem [#allocation3], %s1260
          %1262 = dma.done %s1258, 32
        $region83: #{fop_mixer_forward.1} parent=78 // pred_fallthru
          _
      $region79: #{fop_mixer_forward.1} parent=5 // pred_fallthru
        _
    $region6: #{fop_mixer_forward.1} parent=1 // loop_footer
      %s20 = sadd.s32 1, %s16
    $region7: #{fop_mixer_forward.1} parent=1 // loop_footer_branch
      %15 = sbr.rel target = $region3
    $region8: #{fop_mixer_forward.1} parent=1 // loop_exit
      _
    %1263 = vsyncpa [#allocation4], 1
    %s1264 = scalar_lea.sflag [#allocation4], 1
    %1265 = vsyncpa %s1264, 1

</llo_original>
